<compile_context>
chip_gen: v7x
topology: tpu7x:2x2x1
jax: 0.10.0
libtpu: 0.0.40
codegen_flags: <defaults>
</compile_context>

<pallas_src>
import functools
import math

import jax
import jax.numpy as jnp
from jax import lax
from jax.experimental import pallas as pl
from jax.experimental.pallas import tpu as pltpu

# Finite stand-in for -inf: keeps exp() NaN-free when an entire (tq,tkv) score
# tile is masked to -inf (running max stays finite, exp(-inf - finite) == 0).
_NEG_INF = -1e30

# Explicit scoped-VMEM cap: well above every tile footprint used here and
# within v7x's 64 MiB physical VMEM (v5e/v6e have 128 MiB).
_VMEM_LIMIT_BYTES = 48 * 1024 * 1024
# Footprint budget for keeping the full contraction dim resident in a linear.
_LINEAR_NOSPLIT_BUDGET = 20 * 1024 * 1024
# Footprint budget (incl. double buffer) for keeping a shared mask VMEM-resident.
_MASK_RESIDENT_BUDGET = 24 * 1024 * 1024


def _tile_size(dim, target, align):
    """Largest multiple of `align` that divides `dim` and is <= target.
    Falls back to the full dim (always a legal Pallas block)."""
    if dim <= target:
        return dim
    t = (target // align) * align
    while t >= align:
        if dim % t == 0:
            return t
        t -= align
    return dim


# ---------------------------------------------------------------------------
# Kernel 1: tiled linear  y = x @ w_t  with the weight pre-transposed to (K,N)
# once in the wrapper (weights are constants in inference), so the MXU sees a
# native (tm,tk)x(tk,tn) contraction with no per-tile transposes.
# ---------------------------------------------------------------------------
def _linear_kernel_nosplit(x_ref, w_ref, o_ref):
    # Full-K matmul: one MXU pass per (i, j) tile, no accumulator carry.
    o_ref[...] = jnp.dot(
        x_ref[...], w_ref[...], preferred_element_type=jnp.float32
    ).astype(o_ref.dtype)


def _linear_kernel_ksplit(x_ref, w_ref, o_ref, acc_ref):
    @pl.when(pl.program_id(2) == 0)
    def _init():
        acc_ref[...] = jnp.zeros_like(acc_ref)

    acc_ref[...] += jnp.dot(
        x_ref[...], w_ref[...], preferred_element_type=jnp.float32
    )

    @pl.when(pl.program_id(2) == pl.num_programs(2) - 1)
    def _done():
        o_ref[...] = acc_ref[...].astype(o_ref.dtype)


def pallas_linear(x, w_t, *, tm=512, tn=512, tk_target=1024):
    """x: (M, K), w_t: (K, N)  ->  (M, N) = x @ w_t.
    MXU operands stay in the input dtype (bf16 in => bf16 MXU); acc is f32."""
    M, K = x.shape
    K2, N = w_t.shape
    assert K == K2
    tm = _tile_size(M, tm, 8)
    tn = _tile_size(N, tn, 128)
    itemsize = int(x.dtype.itemsize)

    cost = pl.CostEstimate(
        flops=int(2 * M * N * K),
        transcendentals=0,
        bytes_accessed=int((M * K + K * N + M * N) * itemsize),
    )

    # Footprint with the whole contraction dim resident (double-buffered).
    nosplit_bytes = itemsize * 2 * (tm * K + K * tn + tm * tn)
    if nosplit_bytes <= _LINEAR_NOSPLIT_BUDGET:
        grid = (M // tm, N // tn)
        return pl.pallas_call(
            _linear_kernel_nosplit,
            out_shape=jax.ShapeDtypeStruct((M, N), x.dtype),
            grid_spec=pltpu.PrefetchScalarGridSpec(
                num_scalar_prefetch=0,
                grid=grid,
                in_specs=[
                    pl.BlockSpec((tm, K), lambda i, j: (i, 0)),
                    pl.BlockSpec((K, tn), lambda i, j: (0, j)),
                ],
                out_specs=pl.BlockSpec((tm, tn), lambda i, j: (i, j)),
            ),
            compiler_params=pltpu.CompilerParams(
                dimension_semantics=("parallel", "parallel"),
                vmem_limit_bytes=_VMEM_LIMIT_BYTES,
            ),
            cost_estimate=cost,
        )(x, w_t)

    # Large-K fallback: split the contraction over a third ("arbitrary") axis.
    tk = _tile_size(K, tk_target, 128)
    grid = (M // tm, N // tn, K // tk)
    return pl.pallas_call(
        _linear_kernel_ksplit,
        out_shape=jax.ShapeDtypeStruct((M, N), x.dtype),
        grid_spec=pltpu.PrefetchScalarGridSpec(
            num_scalar_prefetch=0,
            grid=grid,
            in_specs=[
                pl.BlockSpec((tm, tk), lambda i, j, k: (i, k)),
                pl.BlockSpec((tk, tn), lambda i, j, k: (k, j)),
            ],
            out_specs=pl.BlockSpec((tm, tn), lambda i, j, k: (i, j)),
            scratch_shapes=[pltpu.VMEM((tm, tn), jnp.float32)],
        ),
        compiler_params=pltpu.CompilerParams(
            dimension_semantics=("parallel", "parallel", "arbitrary"),
            vmem_limit_bytes=_VMEM_LIMIT_BYTES,
        ),
        cost_estimate=cost,
    )(x, w_t)


# ---------------------------------------------------------------------------
# Kernel 2: flash-style masked attention (online softmax over KV tiles).
# Block views seen by the kernel (leading batch/head dims squeezed):
#   q: (tq, Dh)  k,v: (tkv, Dh)  out: (tq, Dh)
#   mask: (tq, tkv) streamed tile  -or-  (nk*T, tkv) VMEM-resident slab.
# ---------------------------------------------------------------------------
def _flash_attn_kernel(q_ref, k_ref, v_ref, mask_ref, o_ref,
                       m_sc, l_sc, acc_sc, *,
                       scale, mask_resident, seq_len, block_q):
    kv = pl.program_id(3)

    @pl.when(kv == 0)
    def _init():
        # Finite init (not -inf): NaN-proof against fully -inf-masked tiles.
        m_sc[...] = jnp.full_like(m_sc, _NEG_INF)
        l_sc[...] = jnp.zeros_like(l_sc)
        acc_sc[...] = jnp.zeros_like(acc_sc)

    q = q_ref[...]          # storage dtype -> bf16 MXU operands for bf16 input
    k = k_ref[...]
    v = v_ref[...]

    if mask_resident:
        # Shared (broadcast) mask kept resident in VMEM in a (nk*T, tkv) layout
        # (fetched from HBM once for the whole grid).  Slice the current
        # (tq, tkv) window -- sublane-dim dynamic slice only.
        off = kv * seq_len + pl.program_id(2) * block_q
        if seq_len % 8 == 0 and block_q % 8 == 0:
            off = pl.multiple_of(off, 8)
        mask = mask_ref[pl.ds(off, block_q), :]
    else:
        mask = mask_ref[...]

    # q k^T contracting the last dims (no transpose materialized).  Scale and
    # additive mask are applied to the f32 scores (exact f32 softmax math).
    s = lax.dot_general(
        q, k,
        dimension_numbers=(((1,), (1,)), ((), ())),
        preferred_element_type=jnp.float32,
    )
    s = s * scale + mask.astype(jnp.float32)           # (tq, tkv), f32

    m_prev = m_sc[...]                                   # (tq, 1)
    m_new = jnp.maximum(m_prev, jnp.max(s, axis=-1, keepdims=True))
    alpha = jnp.exp(m_prev - m_new)                      # <= 1, finite
    p = jnp.exp(s - m_new)                               # (tq, tkv), f32

    l_sc[...] = alpha * l_sc[...] + jnp.sum(p, axis=-1, keepdims=True)
    acc_sc[...] = alpha * acc_sc[...] + jnp.dot(
        p.astype(v.dtype), v, preferred_element_type=jnp.float32)
    m_sc[...] = m_new

    @pl.when(kv == pl.num_programs(3) - 1)
    def _finalize():
        # Exact reciprocal (one (tq,1) vector per q tile) for tight parity
        # with the PyTorch reference.
        o_ref[...] = (acc_sc[...] * (1.0 / l_sc[...])).astype(o_ref.dtype)


def _run_flash_attention(inputs, in_specs, out_spec, out_shape, grid,
                         tq, tkv, Dh, scale, mask_resident, seq_len, cost):
    kernel = functools.partial(
        _flash_attn_kernel, scale=scale, mask_resident=mask_resident,
        seq_len=seq_len, block_q=tq)
    return pl.pallas_call(
        kernel,
        out_shape=out_shape,
        grid_spec=pltpu.PrefetchScalarGridSpec(
            num_scalar_prefetch=0,
            grid=grid,
            in_specs=in_specs,
            out_specs=out_spec,
            scratch_shapes=[
                pltpu.VMEM((tq, 1), jnp.float32),     # running max m
                pltpu.VMEM((tq, 1), jnp.float32),     # running denom l
                pltpu.VMEM((tq, Dh), jnp.float32),    # f32 output accumulator
            ],
        ),
        compiler_params=pltpu.CompilerParams(
            dimension_semantics=("parallel", "parallel", "parallel", "arbitrary"),
            vmem_limit_bytes=_VMEM_LIMIT_BYTES,
        ),
        cost_estimate=cost,
    )(*inputs)


def _normalize_mask(flash_mask, B, H, T):
    """Normalise flash_mask (SDPA attn_mask) to an additive 4-D (Bm,Hm,T,T)
    form with Bm in {1,B} and Hm in {1,H}, WITHOUT materialising the
    broadcast over batch/heads."""
    m = jnp.asarray(flash_mask)
    if m.dtype == jnp.bool_:
        # PyTorch SDPA bool mask: True = keep, False = mask out.
        m = jnp.where(m, jnp.float32(0.0), jnp.float32(-jnp.inf))
    while m.ndim < 4:
        m = m[jnp.newaxis]
    Bm, Hm, Tq, Tk = m.shape
    assert Tq == T and Tk == T, "flash_mask must cover the full (T, T) scores"
    assert Bm in (1, B) and Hm in (1, H), "mask batch/head dims must be 1 or full"
    return m


def _prepare_mask(mask4, B, H, T, tq, tkv):
    """Pick the mask delivery strategy.  Shared masks that fit VMEM are made
    resident (fetched once); everything else streams (tq,tkv) tiles with a
    broadcast-aware index map (never duplicated in HBM)."""
    Bm, Hm = mask4.shape[0], mask4.shape[1]
    itemsize = int(mask4.dtype.itemsize)
    shared = (Bm == 1 and Hm == 1)
    resident = shared and (2 * T * T * itemsize <= _MASK_RESIDENT_BUDGET)
    if resident:
        nk = T // tkv
        # (ki, q, kk) slab: rows [ki*T + qi*tq : +tq] are the (qi, ki) window.
        mask_arr = (mask4[0, 0]
                    .reshape(T, nk, tkv)
                    .transpose(1, 0, 2)
                    .reshape(nk * T, tkv))
        mask_spec = pl.BlockSpec((nk * T, tkv), lambda b, h, qi, ki: (0, 0))
        mask_bytes = T * T * itemsize
    else:
        def mask_idx(b, h, qi, ki):
            return (b if Bm == B else 0, h if Hm == H else 0, qi, ki)
        mask_arr = mask4
        mask_spec = pl.BlockSpec((None, None, tq, tkv), mask_idx)
        mask_bytes = B * H * T * T * itemsize
    return mask_arr, mask_spec, resident, mask_bytes


def _attn_cost(B, H, T, Dh, E, tq, qkv_itemsize, mask_bytes):
    nq = max(T // tq, 1)
    bytes_accessed = qkv_itemsize * (
        B * H * T * Dh                 # q
        + 2 * B * H * nq * T * Dh      # k, v re-streamed per q tile
        + B * T * E                    # output
    ) + mask_bytes
    return pl.CostEstimate(
        flops=int(4 * B * H * T * T * Dh),
        transcendentals=int(B * H * T * T),
        bytes_accessed=int(bytes_accessed),
    )


def pallas_attention_fused(qkv, mask4, num_heads, *, tq=512, tkv=512):
    """Head split/merge fused via BlockSpec index maps over the (B,T,3E) qkv
    tensor; output written directly in (B,T,E) layout (lane-dense stores).
    Requires Dh % 128 == 0 so per-head last-dim slices are lane-aligned."""
    B, T, threeE = qkv.shape
    E = threeE // 3
    H = num_heads
    Dh = E // H
    assert Dh % 128 == 0
    tq = _tile_size(T, tq, 8)
    tkv = _tile_size(T, tkv, 128)   # 512 default = 2x the 256-deep MXU on v6e/v7x
    scale = 1.0 / math.sqrt(Dh)
    grid = (B, H, T // tq, T // tkv)

    mask_arr, mask_spec, mask_resident, mask_bytes = _prepare_mask(
        mask4, B, H, T, tq, tkv)

    q_spec = pl.BlockSpec((None, tq, Dh), lambda b, h, qi, ki: (b, qi, h))
    k_spec = pl.BlockSpec((None, tkv, Dh), lambda b, h, qi, ki: (b, ki, H + h))
    v_spec = pl.BlockSpec((None, tkv, Dh), lambda b, h, qi, ki: (b, ki, 2 * H + h))
    o_spec = pl.BlockSpec((None, tq, Dh), lambda b, h, qi, ki: (b, qi, h))

    cost = _attn_cost(B, H, T, Dh, E, tq, int(qkv.dtype.itemsize), mask_bytes)
    out_shape = jax.ShapeDtypeStruct((B, T, E), qkv.dtype)
    return _run_flash_attention((qkv, qkv, qkv, mask_arr),
                                [q_spec, k_spec, v_spec, mask_spec],
                                o_spec, out_shape, grid, tq, tkv, Dh, scale,
                                mask_resident, T, cost)


def pallas_attention_split(qkv, mask4, num_heads, *, tq=512, tkv=512):
    """Fallback for head dims that are not lane-aligned (Dh % 128 != 0): head
    split/merge happens in XLA (extra full-tensor round trips).  A fully fused
    small-head-dim path (e.g. two heads per 128-lane block for Dh=64) is a
    known follow-up optimisation."""
    B, T, threeE = qkv.shape
    E = threeE // 3
    H = num_heads
    Dh = E // H
    q, k, v = jnp.split(qkv, 3, axis=-1)
    q = q.reshape(B, T, H, Dh).transpose(0, 2, 1, 3)
    k = k.reshape(B, T, H, Dh).transpose(0, 2, 1, 3)
    v = v.reshape(B, T, H, Dh).transpose(0, 2, 1, 3)

    tq = _tile_size(T, tq, 8)
    tkv = _tile_size(T, tkv, 128)
    scale = 1.0 / math.sqrt(Dh)
    grid = (B, H, T // tq, T // tkv)

    mask_arr, mask_spec, mask_resident, mask_bytes = _prepare_mask(
        mask4, B, H, T, tq, tkv)

    q_spec = pl.BlockSpec((None, None, tq, Dh), lambda b, h, qi, ki: (b, h, qi, 0))
    kv_spec = pl.BlockSpec((None, None, tkv, Dh), lambda b, h, qi, ki: (b, h, ki, 0))
    o_spec = pl.BlockSpec((None, None, tq, Dh), lambda b, h, qi, ki: (b, h, qi, 0))

    cost = _attn_cost(B, H, T, Dh, E, tq, int(qkv.dtype.itemsize), mask_bytes)
    out_shape = jax.ShapeDtypeStruct((B, H, T, Dh), qkv.dtype)
    y = _run_flash_attention((q, k, v, mask_arr),
                             [q_spec, kv_spec, kv_spec, mask_spec],
                             o_spec, out_shape, grid, tq, tkv, Dh, scale,
                             mask_resident, T, cost)
    return y.transpose(0, 2, 1, 3).reshape(B, T, E)


# ---------------------------------------------------------------------------
# Full forward pass (matches CausalSelfAttention.forward with training=False).
# ---------------------------------------------------------------------------
def causal_self_attention_forward(x, flash_mask, w_attn, w_proj, num_heads,
                                  *, attn_block_q=512, attn_block_kv=512):
    """
    x:          (B, T, E)
    flash_mask: additive float (or bool) mask broadcastable to (B, H, T, T)
    w_attn:     (3E, E)  -- PyTorch Linear weight (out_features, in_features)
    w_proj:     (E, E)
    """
    B, T, E = x.shape
    H = num_heads
    Dh = E // H

    # One-time weight transposes to (in, out) so the matmul kernel consumes a
    # native (tm,tk)x(tk,tn) layout (no per-tile MXU-side transposition).  In
    # a real deployment these would be transposed once and cached.
    w_attn_t = w_attn.T          # (E, 3E)
    w_proj_t = w_proj.T          # (E, E)

    # c_attn
    qkv = pallas_linear(x.reshape(B * T, E), w_attn_t).reshape(B, T, 3 * E)

    # Attention with flash-style KV tiling.  Fused head slicing when the head
    # dim is lane-aligned; generic fallback otherwise.
    mask4 = _normalize_mask(flash_mask, B, H, T)
    if Dh % 128 == 0:
        y = pallas_attention_fused(qkv, mask4, H, tq=attn_block_q, tkv=attn_block_kv)
    else:
        y = pallas_attention_split(qkv, mask4, H, tq=attn_block_q, tkv=attn_block_kv)

    # c_proj (resid dropout is identity in eval mode).
    out = pallas_linear(y.reshape(B * T, E), w_proj_t).reshape(B, T, E)
    return out


# ---------------------------------------------------------------------------
# Pure-JAX reference for correctness checking.
# ---------------------------------------------------------------------------
def reference_forward(x, flash_mask, w_attn, w_proj, num_heads):
    B, T, E = x.shape
    H = num_heads
    Dh = E // H
    qkv = x @ w_attn.T
    q, k, v = jnp.split(qkv, 3, axis=-1)
    q = q.reshape(B, T, H, Dh).transpose(0, 2, 1, 3)
    k = k.reshape(B, T, H, Dh).transpose(0, 2, 1, 3)
    v = v.reshape(B, T, H, Dh).transpose(0, 2, 1, 3)
    mask = jnp.asarray(flash_mask)
    while mask.ndim < 4:
        mask = mask[jnp.newaxis]
    s = jnp.einsum("bhqd,bhkd->bhqk", q, k) / math.sqrt(Dh) + mask
    p = jax.nn.softmax(s.astype(jnp.float32), axis=-1).astype(x.dtype)
    y = jnp.einsum("bhqk,bhkd->bhqd", p, v)
    y = y.transpose(0, 2, 1, 3).reshape(B, T, E)
    return y @ w_proj.T


if __name__ == "__main__":

    def run_case(name, B, T, E, H, seed, dtype, mask_shape, atol, rtol, **fwd_kw):
        key = jax.random.PRNGKey(seed)
        kx, km, ka, kp = jax.random.split(key, 4)
        x = jax.random.normal(kx, (B, T, E), dtype=jnp.float32).astype(dtype)
        flash_mask = 0.1 * jax.random.normal(km, mask_shape, dtype=jnp.float32)
        bound = 1.0 / math.sqrt(E)
        w_attn = jax.random.uniform(ka, (3 * E, E), minval=-bound, maxval=bound,
                                    dtype=jnp.float32).astype(dtype)
        w_proj = jax.random.uniform(kp, (E, E), minval=-bound, maxval=bound,
                                    dtype=jnp.float32).astype(dtype)

        out = causal_self_attention_forward(x, flash_mask, w_attn, w_proj, H,
                                            **fwd_kw)
        out = jax.block_until_ready(out)
        assert out.shape == (B, T, E)
        ref = reference_forward(x, flash_mask, w_attn, w_proj, H)
        ok = jnp.allclose(out.astype(jnp.float32), ref.astype(jnp.float32),
                          atol=atol, rtol=rtol)
        assert ok, f"{name}: mismatch vs reference (B={B}, T={T}, E={E}, H={H})"

    # 1) Small shapes consistent with the module (Dh=8): generic fallback path
    #    and per-(b,h) tiled mask streaming.
    run_case("small-f32", B=2, T=8, E=32, H=4, seed=0, dtype=jnp.float32,
             mask_shape=(2, 4, 8, 8), atol=1e-2, rtol=1e-2)

    # 2) Lane-aligned head_dim=128: fused head indexing, shared (1,1,T,T) mask
    #    kept VMEM-resident, multiple q / kv tiles exercising the dynamic
    #    mask-window slice.
    run_case("fused-f32", B=2, T=256, E=256, H=2, seed=1, dtype=jnp.float32,
             mask_shape=(1, 1, 256, 256), atol=1e-2, rtol=1e-2,
             attn_block_q=64, attn_block_kv=128)

    # 3) bf16 activations/weights -> bf16 MXU operands with f32 accumulation;
    #    2-D (T,T) mask tests normalisation + the resident path.
    run_case("fused-bf16", B=1, T=128, E=256, H=2, seed=2, dtype=jnp.bfloat16,
             mask_shape=(128, 128), atol=5e-2, rtol=5e-2)

    print("KERNEL_OK")
</pallas_src>

<mosaic_0001>
module attributes {stable_mosaic.version = 11 : i64} {
  func.func @_linear_kernel_nosplit(%arg0: i32, %arg1: i32, %arg2: memref<16x32xf32, #tpu.memory_space<vmem>>, %arg3: memref<32x96xf32, #tpu.memory_space<vmem>>, %arg4: memref<16x96xf32, #tpu.memory_space<vmem>>) attributes {dimension_semantics = [#tpu.dimension_semantics<parallel>, #tpu.dimension_semantics<parallel>], iteration_bounds = array<i64: 1, 1>, scalar_prefetch = 0 : i64, scratch_operands = 0 : i64, tpu.core_type = #tpu.core_type<tc>, window_params = [{transform_indices = @transform_0, window_bounds = array<i64: 16, 32>}, {transform_indices = @transform_1, window_bounds = array<i64: 32, 96>}, {transform_indices = @transform_2, window_bounds = array<i64: 16, 96>}]} {
    %c0 = arith.constant 0 : index
    %c0_0 = arith.constant 0 : index
    %0 = vector.load %arg2[%c0, %c0_0] : memref<16x32xf32, #tpu.memory_space<vmem>>, vector<16x32xf32>
    %c0_1 = arith.constant 0 : index
    %c0_2 = arith.constant 0 : index
    %1 = vector.load %arg3[%c0_1, %c0_2] : memref<32x96xf32, #tpu.memory_space<vmem>>, vector<32x96xf32>
    %cst = arith.constant dense<0.000000e+00> : vector<16x96xf32>
    %2 = tpu.matmul %0, %1, %cst {dimension_numbers = #tpu.dot_dimension_numbers<[1], [0], [0], [1], [0, 0, 1, 1], [], []>} : vector<16x32xf32>, vector<32x96xf32>, vector<16x96xf32> -> vector<16x96xf32>
    %c0_3 = arith.constant 0 : index
    %c0_4 = arith.constant 0 : index
    %3 = vector.load %arg4[%c0_3, %c0_4] : memref<16x96xf32, #tpu.memory_space<vmem>>, vector<16x96xf32>
    tpu.vector_store %arg4[%c0_3, %c0_4], %2 {strides = array<i32>} : memref<16x96xf32, #tpu.memory_space<vmem>>, vector<16x96xf32>,
    return
  }
  func.func @transform_0(%arg0: i32, %arg1: i32) -> (i32, i32) {
    %c0_i32 = arith.constant 0 : i32
    %c0_i32_0 = arith.constant 0 : i32
    return %arg0, %c0_i32 : i32, i32
  }
  func.func @transform_1(%arg0: i32, %arg1: i32) -> (i32, i32) {
    %c0_i32 = arith.constant 0 : i32
    %c0_i32_0 = arith.constant 0 : i32
    return %c0_i32, %arg1 : i32, i32
  }
  func.func @transform_2(%arg0: i32, %arg1: i32) -> (i32, i32) {
    %c0_i32 = arith.constant 0 : i32
    return %arg0, %arg1 : i32, i32
  }
}

</mosaic_0001>

<llo_original>
// kernel: tpu_custom_call.1
$region0: #{tpu_custom_call.1}
  #allocation0 [shape = 'u32[]', space=smem, size = 0x4, offset = 0x4, fixed_abs, tag = 'smem constant byte address 0x4 - core index']
  #allocation1 [shape = 'u32[144,128]{1,0:T(1,128)}', space=vmem, size = 0x12000, scoped, tag = 'internal scratch']
  %s0 = inlined_call_operand.hbm [shape: f32[16,32], index: 0, kind: input, shape index: {}]
  %s1 = inlined_call_operand.hbm [shape: f32[32,96], index: 1, kind: input, shape index: {}]
  %s2 = inlined_call_operand.hbm [shape: f32[16,96], index: 2, kind: output, shape index: {}]
  %s3 = sld [smem:[#allocation0]]
  $region26: #{tpu_custom_call.1} parent=0
    _
  %s5 = ssub.s32 1, %s3
  %s6 = scalar_select 0, %s5, %s3
  $region1: #{tpu_custom_call.1} parent=0
    #allocation2 [shape = 'u8[8192]{0}', space=vmem, size = 0x2000, scoped, tag = 'input window, operand 0, single buffered']
    #allocation3 [shape = 's32[1]{0}', space=sflag, size = 0x4, scoped, tag = 'scoped memory for tpu_custom_call.1']
    #allocation4 [shape = 's32[1]{0}', space=sflag, size = 0x4, scoped, tag = 'scoped memory for tpu_custom_call.1']
    #allocation5 [shape = 'u8[16384]{0}', space=vmem, size = 0x4000, scoped, tag = 'input window, operand 1, single buffered']
    #allocation6 [shape = 's32[1]{0}', space=sflag, size = 0x4, scoped, tag = 'scoped memory for tpu_custom_call.1']
    #allocation7 [shape = 'u8[8192]{0}', space=vmem, size = 0x2000, scoped, tag = 'output window, operand 0, single buffered']
    %7 = vsyncpa [#allocation3], 0
    %8 = vsyncpa [#allocation6], 0
    %9 = vsyncpa [#allocation4], 0
    // Predicated region
    $region2: #{tpu_custom_call.1} parent=1 // pred_check
      _
    $region3: #{tpu_custom_call.1} parent=1 // pred_check_branch
      %11 = sbr.rel (0) target = $region5
    $region4: #{tpu_custom_call.1} parent=1 // pred_region
      %s13 = ssub.s32 256, 256
      %14 = vsyncadd [#allocation3], %s13
      %s15 = sshll.u32 [#allocation2], 4
      %s16 = int_to_ptr.vmem [resolvable:$true] %s15
      %21 = dma.hbm_to_vmem [thread:$0]  %s0, 256, %s16, [#allocation3], 128, 128, 8
    $region5: #{tpu_custom_call.1} parent=1 // pred_fallthru
      _
    // Predicated region
    $region6: #{tpu_custom_call.1} parent=1 // pred_check
      _
    $region7: #{tpu_custom_call.1} parent=1 // pred_check_branch
      %23 = sbr.rel (0) target = $region9
    $region8: #{tpu_custom_call.1} parent=1 // pred_region
      %s25 = ssub.s32 512, 512
      %26 = vsyncadd [#allocation6], %s25
      %s27 = sshll.u32 [#allocation5], 4
      %s28 = int_to_ptr.vmem [resolvable:$true] %s27
      %33 = dma.hbm_to_vmem [thread:$0]  %s1, 512, %s28, [#allocation6], 128, 128, 8
    $region9: #{tpu_custom_call.1} parent=1 // pred_fallthru
      _
    // Predicated region
    $region10: #{tpu_custom_call.1} parent=1 // pred_check
      _
    $region11: #{tpu_custom_call.1} parent=1 // pred_check_branch
      %35 = sbr.rel (0) target = $region13
    $region12: #{tpu_custom_call.1} parent=1 // pred_region
      %36 = dma.done [#allocation3], 256
    $region13: #{tpu_custom_call.1} parent=1 // pred_fallthru
      _
    // Predicated region
    $region14: #{tpu_custom_call.1} parent=1 // pred_check
      _
    $region15: #{tpu_custom_call.1} parent=1 // pred_check_branch
      %38 = sbr.rel (0) target = $region17
    $region16: #{tpu_custom_call.1} parent=1 // pred_region
      %39 = dma.done [#allocation6], 512
    $region17: #{tpu_custom_call.1} parent=1 // pred_fallthru
      _
    %v40 = vld [vmem:[#allocation2] sm:$0xff]
    %v41 = vld [vmem:[#allocation2 + $0x8] sm:$0xff]
    %v42 = vld [vmem:[#allocation5] sm:$0xff]
    %v43 = vld [vmem:[#allocation5 + $0x8] sm:$0xff]
    %v44 = vld [vmem:[#allocation5 + $0x10] sm:$0xff]
    %v45 = vld [vmem:[#allocation5 + $0x18] sm:$0xff]
    %vm46 = vcmask 261120
    %v48 = vsel %vm46, %v40, 0
    %v51 = vsel %vm46, %v41, 0
    %53 = vmatprep.subr.mxu0 0.0
    %54 = vmatpush1.msra.mxu0 %v42
    %55 = vmatprep.subr.mxu0 0.0
    %56 = vmatpush1.msra.mxu0 %v43
    %57 = vmatprep.subr.mxu0 0.0
    %58 = vmatpush1.msra.mxu0 %v44
    %59 = vmatprep.subr.mxu0 0.0
    %60 = vmatpush1.msra.mxu0 %v45
    %61 = vmatprep.subr.mxu0 0.0
    %62 = vmatpush1.msra.mxu0 0.0
    %63 = vmatprep.subr.mxu0 0.0
    %64 = vmatpush1.msra.mxu0 0.0
    %65 = vmatprep.subr.mxu0 0.0
    %66 = vmatpush1.msra.mxu0 0.0
    %67 = vmatprep.subr.mxu0 0.0
    %68 = vmatpush1.msra.mxu0 0.0
    %69 = vmatprep.subr.mxu0 0.0
    %70 = vmatpush1.msra.mxu0 0.0
    %71 = vmatprep.subr.mxu0 0.0
    %72 = vmatpush1.msra.mxu0 0.0
    %73 = vmatprep.subr.mxu0 0.0
    %74 = vmatpush1.msra.mxu0 0.0
    %75 = vmatprep.subr.mxu0 0.0
    %76 = vmatpush1.msra.mxu0 0.0
    %77 = vmatprep.subr.mxu0 0.0
    %78 = vmatpush1.msra.mxu0 0.0
    %79 = vmatprep.subr.mxu0 0.0
    %80 = vmatpush1.msra.mxu0 0.0
    %81 = vmatprep.subr.mxu0 0.0
    %82 = vmatpush1.msra.mxu0 0.0
    %83 = vmatprep.subr.mxu0 0.0
    %84 = vmatpush1.msra.mxu0 0.0
    %85 = vmatprep.subr.mxu0 0.0
    %86 = vmatpush1.msra.mxu0 0.0
    %87 = vmatprep.subr.mxu0 0.0
    %88 = vmatpush1.msra.mxu0 0.0
    %89 = vmatprep.subr.mxu0 0.0
    %90 = vmatpush1.msra.mxu0 0.0
    %91 = vmatprep.subr.mxu0 0.0
    %92 = vmatpush1.msra.mxu0 0.0
    %93 = vmatprep.subr.mxu0 0.0
    %94 = vmatpush1.msra.mxu0 0.0
    %95 = vmatprep.subr.mxu0 0.0
    %96 = vmatpush1.msra.mxu0 0.0
    %97 = vmatprep.subr.mxu0 0.0
    %98 = vmatpush1.msra.mxu0 0.0
    %99 = vmatprep.subr.mxu0 0.0
    %100 = vmatpush1.msra.mxu0 0.0
    %101 = vmatprep.subr.mxu0 0.0
    %102 = vmatpush1.msra.mxu0 0.0
    %103 = vmatprep.subr.mxu0 0.0
    %104 = vmatpush1.msra.mxu0 0.0
    %105 = vmatprep.subr.mxu0 0.0
    %106 = vmatpush1.msra.mxu0 0.0
    %107 = vmatprep.subr.mxu0 0.0
    %108 = vmatpush1.msra.mxu0 0.0
    %109 = vmatprep.subr.mxu0 0.0
    %110 = vmatpush1.msra.mxu0 0.0
    %111 = vmatprep.subr.mxu0 0.0
    %112 = vmatpush1.msra.mxu0 0.0
    %113 = vmatprep.subr.mxu0 0.0
    %114 = vmatpush1.msra.mxu0 0.0
    %115 = vmatprep.subr.mxu0 0.0
    %116 = vmatpush1.msra.mxu0 0.0
    %117 = vmatprep.mubr.f32.mxu0 0.0
    %118 = vmatmul.mubr.f32.gmra.mrb[0].mxu0 %v48
    %v119 = vpop.f32.mrb[0].mxu0
    %v120 = vadd.f32 0.0, %v119
    %v121 = vpop.f32.mrb[0].mxu0
    %122 = vmatprep.mubr.f32.mxu0 0.0
    %123 = vmatmul.mubr.f32.gmra.mrb[0].mxu0 %v51
    %v124 = vpop.f32.mrb[0].mxu0
    %v125 = vadd.f32 0.0, %v124
    %v126 = vpop.f32.mrb[0].mxu0
    %127 = vdwg.mxu0
    %vm128 = vcmask 785408
    %129 = vst.msk [vmem:[#allocation7] sm:$0xff] %vm128, %v120
    %130 = vst.msk [vmem:[#allocation7 + $0x8] sm:$0xff] %vm128, %v125
    // Predicated region
    $region18: #{tpu_custom_call.1} parent=1 // pred_check
      _
    $region19: #{tpu_custom_call.1} parent=1 // pred_check_branch
      %132 = sbr.rel (0) target = $region21
    $region20: #{tpu_custom_call.1} parent=1 // pred_region
      %s134 = ssub.s32 256, 256
      %135 = vsyncadd [#allocation4], %s134
      %s136 = sshll.u32 [#allocation7], 4
      %s137 = int_to_ptr.vmem [resolvable:$true] %s136
      %142 = dma.vmem_to_hbm [thread:$0]  %s137, 256, %s2, [#allocation4], 128, 128, 8
    $region21: #{tpu_custom_call.1} parent=1 // pred_fallthru
      _
    // Predicated region
    $region22: #{tpu_custom_call.1} parent=1 // pred_check
      _
    $region23: #{tpu_custom_call.1} parent=1 // pred_check_branch
      %144 = sbr.rel (0) target = $region25
    $region24: #{tpu_custom_call.1} parent=1 // pred_region
      %145 = dma.done [#allocation4], 256
    $region25: #{tpu_custom_call.1} parent=1 // pred_fallthru
      _
    %146 = vsyncpa [#allocation3], 1
    %147 = vsyncpa [#allocation6], 1
    %148 = vsyncpa [#allocation4], 1

</llo_original>
